<compile_context>
chip_gen: v6e
topology: v6e:2x2x1
jax: 0.10.0
libtpu: 0.0.40
codegen_flags: <defaults>
</compile_context>

<pallas_src>
import math

import jax
import jax.numpy as jnp
from jax.experimental import pallas as pl
from jax.experimental.pallas import tpu as pltpu


_LANE_CANDIDATES = (1024, 512, 256, 128)  # lane-dense last-dim widths
_SUBLANE = 8
_MAX_BLOCK_BYTES = 2 << 20     # 2 MiB per block per operand (v5e-safe buffering)
_MIN_GRID_STEPS = 8            # give v7x's two TensorCores something to split
_BYPASS_ELEMS = 1 << 16        # below this, a fused plain-jnp scale beats dispatch


def _neg_scale_kernel(coeff_ref, g_ref, o_ref):
    # Backward of GRL on one block: dx = -coeff * g  (pure VPU elementwise).
    c = coeff_ref[0]                                     # runtime scalar from SMEM
    o_ref[...] = (g_ref[...] * (-c)).astype(o_ref.dtype)


def _choose_block_rows(rows: int, lane: int, itemsize: int) -> int:
    """Block rows: VMEM-safe, sublane-aligned, and >= _MIN_GRID_STEPS grid steps."""
    if rows <= _SUBLANE:
        return rows                                      # single full-extent block
    cap = max(_SUBLANE,
              (_MAX_BLOCK_BYTES // (lane * itemsize)) // _SUBLANE * _SUBLANE)
    target = -(-rows // _MIN_GRID_STEPS)                 # cdiv(rows, steps)
    target = -(-target // _SUBLANE) * _SUBLANE           # round up to sublane multiple
    block_rows = max(_SUBLANE, min(cap, target))
    return rows if block_rows >= rows else block_rows


def _neg_scale_pallas(g2: jax.Array, coeff: jax.Array) -> jax.Array:
    rows, lane = g2.shape
    dtype = g2.dtype
    block_rows = _choose_block_rows(rows, lane, jnp.dtype(dtype).itemsize)
    grid = (pl.cdiv(rows, block_rows),)                  # partial edge block is masked
    coeff_arr = jnp.asarray(coeff, jnp.float32).reshape(1)

    return pl.pallas_call(
        _neg_scale_kernel,
        out_shape=jax.ShapeDtypeStruct((rows, lane), dtype),
        grid=grid,
        in_specs=[
            pl.BlockSpec(memory_space=pltpu.MemorySpace.SMEM),    # coeff scalar
            pl.BlockSpec((block_rows, lane), lambda i: (i, 0)),   # cotangent tile
        ],
        out_specs=pl.BlockSpec((block_rows, lane), lambda i: (i, 0)),
        input_output_aliases={1: 0},     # cotangent buffer is dead after this op
        compiler_params=pltpu.CompilerParams(
            dimension_semantics=("parallel",),
        ),
    )(coeff_arr, g2)


def _grl_bwd_impl(g: jax.Array, coeff: jax.Array) -> jax.Array:
    shape, dtype = g.shape, g.dtype
    total = math.prod(shape) if shape else 1
    lane = next((c for c in _LANE_CANDIDATES if total % c == 0), 0)

    if total < _BYPASS_ELEMS or lane == 0:
        # Tiny grads (dispatch overhead dominates) or lane-unaligned totals:
        # a plain XLA scale is already the optimal 1 read + 1 write and can
        # fuse into the surrounding backward graph.
        return (g * (-coeff)).astype(dtype)

    g2 = g.reshape(total // lane, lane)                  # free; no pad, no slice
    return _neg_scale_pallas(g2, coeff).reshape(shape)


@jax.custom_vjp
def _grl_core(x: jax.Array, coeff: jax.Array) -> jax.Array:
    del coeff
    return x                                             # identity: no kernel, no copy


def _grl_fwd(x, coeff):
    return x, coeff


def _grl_bwd(coeff, g):
    return _grl_bwd_impl(g, coeff), jnp.zeros_like(coeff)


_grl_core.defvjp(_grl_fwd, _grl_bwd)


def grl(x: jax.Array, coeff=1.0) -> jax.Array:
    """GRL: identity forward, dx = -coeff * g backward.

    `coeff` may be a Python float or a traced scalar (e.g. a DANN lambda that
    changes every step) — the Pallas kernel never specializes on its value.
    """
    return _grl_core(x, jnp.asarray(coeff, dtype=jnp.float32))


if __name__ == "__main__":
    key = jax.random.PRNGKey(0)
    k1, k2, k3, k4, k5, k6 = jax.random.split(key, 6)
    coeff = 0.75

    # 1) Small NCHW feature map (module-typical shape): identity forward,
    #    small-size bypass backward.
    x = jax.random.normal(k1, (2, 4, 16, 16), dtype=jnp.float32)
    y = grl(x, coeff)
    jax.block_until_ready(y)
    assert y.shape == x.shape and y.dtype == x.dtype
    assert bool(jnp.all(y == x))

    ct = jax.random.normal(k2, x.shape, dtype=jnp.float32)
    _, vjp_fn = jax.vjp(lambda v: grl(v, coeff), x)
    (dx,) = vjp_fn(ct)
    jax.block_until_ready(dx)
    assert bool(jnp.allclose(dx, -coeff * ct, rtol=1e-6, atol=1e-6))

    # 2) Larger, lane-aligned gradient: exercises the Pallas kernel
    #    (rows=256, block_rows=32, grid=(8,)).
    x2 = jax.random.normal(k3, (2, 32, 64, 64), dtype=jnp.float32)
    ct2 = jax.random.normal(k4, x2.shape, dtype=jnp.float32)
    _, vjp_fn2 = jax.vjp(lambda v: grl(v, coeff), x2)
    (dx2,) = vjp_fn2(ct2)
    jax.block_until_ready(dx2)
    assert dx2.shape == x2.shape and dx2.dtype == x2.dtype
    assert bool(jnp.allclose(dx2, -coeff * ct2, rtol=1e-6, atol=1e-6))

    # 3) Odd row count (135 rows of 1024): exercises the masked partial edge
    #    block of the cdiv grid.
    x3 = jax.random.normal(k5, (3, 5, 96, 96), dtype=jnp.float32)
    ct3 = jax.random.normal(k6, x3.shape, dtype=jnp.float32)
    _, vjp_fn3 = jax.vjp(lambda v: grl(v, coeff), x3)
    (dx3,) = vjp_fn3(ct3)
    jax.block_until_ready(dx3)
    assert bool(jnp.allclose(dx3, -coeff * ct3, rtol=1e-6, atol=1e-6))

    # 4) coeff as a traced scalar under jit (no per-value recompiles).
    grad_fn = jax.jit(jax.grad(lambda v, c: jnp.sum(grl(v, c))))
    dxj = grad_fn(x2, jnp.float32(coeff))
    jax.block_until_ready(dxj)
    assert bool(jnp.allclose(dxj, jnp.full_like(x2, -coeff), rtol=1e-6, atol=1e-6))

    print("KERNEL_OK")
</pallas_src>

<mosaic_0001>
module attributes {stable_mosaic.version = 11 : i64} {
  func.func @_neg_scale_kernel(%arg0: i32, %arg1: memref<1xf32, #tpu.memory_space<smem>>, %arg2: memref<32x1024xf32, #tpu.memory_space<vmem>>, %arg3: memref<32x1024xf32, #tpu.memory_space<vmem>>) attributes {dimension_semantics = [#tpu.dimension_semantics<parallel>], iteration_bounds = array<i64: 8>, scalar_prefetch = 0 : i64, scratch_operands = 0 : i64, tpu.core_type = #tpu.core_type<tc>, window_params = [{transform_indices = @transform_0, window_bounds = array<i64: 1>}, {transform_indices = @transform_1, window_bounds = array<i64: 32, 1024>}, {transform_indices = @transform_2, window_bounds = array<i64: 32, 1024>}]} {
    %c0 = arith.constant 0 : index
    %0 = memref.load %arg1[%c0] : memref<1xf32, #tpu.memory_space<smem>>
    %c0_0 = arith.constant 0 : index
    %c0_1 = arith.constant 0 : index
    %1 = vector.load %arg2[%c0_0, %c0_1] : memref<32x1024xf32, #tpu.memory_space<vmem>>, vector<32x1024xf32>
    %cst = arith.constant 0.000000e+00 : f32
    %2 = arith.subf %cst, %0 : f32
    %3 = vector.broadcast %2 : f32 to vector<32x1024xf32>
    %4 = arith.mulf %1, %3 : vector<32x1024xf32>
    %c0_2 = arith.constant 0 : index
    %c0_3 = arith.constant 0 : index
    %5 = vector.load %arg3[%c0_2, %c0_3] : memref<32x1024xf32, #tpu.memory_space<vmem>>, vector<32x1024xf32>
    tpu.vector_store %arg3[%c0_2, %c0_3], %4 {strides = array<i32>} : memref<32x1024xf32, #tpu.memory_space<vmem>>, vector<32x1024xf32>,
    return
  }
  func.func @transform_0(%arg0: i32) -> i32 {
    %c0_i32 = arith.constant 0 : i32
    %c0_i32_0 = arith.constant 0 : i32
    return %c0_i32 : i32
  }
  func.func @transform_1(%arg0: i32) -> (i32, i32) {
    %c0_i32 = arith.constant 0 : i32
    %c0_i32_0 = arith.constant 0 : i32
    return %arg0, %c0_i32 : i32, i32
  }
  func.func @transform_2(%arg0: i32) -> (i32, i32) {
    %c0_i32 = arith.constant 0 : i32
    %c0_i32_0 = arith.constant 0 : i32
    return %arg0, %c0_i32 : i32, i32
  }
}

</mosaic_0001>

<llo_original>
// kernel: tpu_custom_call.1
$region0: #{tpu_custom_call.1}
  #allocation0 [shape = 'u32[]', space=smem, size = 0x4, offset = 0x4, fixed_abs, tag = 'smem constant byte address 0x4 - core index']
  #allocation1 [shape = 'u32[144,128]{1,0:T(1,128)}', space=vmem, size = 0x12000, scoped, tag = 'internal scratch']
  #allocation2 [shape = 'f32[1]{0:T(128)S(6)}', space=smem, size = 0x200, scoped, tag = 'scoped memory for tpu_custom_call.1']
  %s0 = inlined_call_operand.<no memory space> [shape: f32[1], index: 0, kind: input, shape index: {}]
  %s1 = inlined_call_operand.hbm [shape: f32[256,1024], index: 1, kind: input, shape index: {}, may-alias: {1,2}]
  %s2 = inlined_call_operand.hbm [shape: f32[256,1024], index: 2, kind: output, shape index: {}, may-alias: {1,2}]
  %s3 = sld [smem:[#allocation0]]
  $region45: #{tpu_custom_call.1} parent=0
    _
  %s5 = ssub.s32 1, %s3
  %s6 = scalar_select 0, %s5, %s3
  %7 = sst [smem:[#allocation2]] %s0
  $region1: #{tpu_custom_call.1} parent=0
    #allocation3 [shape = 'u8[262144]{0}', space=vmem, size = 0x40000, scoped, tag = 'input window, operand 1']
    #allocation4 [shape = 's32[2]{0}', space=sflag, size = 0x8, scoped, tag = 'scoped memory for tpu_custom_call.1']
    #allocation5 [shape = 's32[2]{0}', space=sflag, size = 0x8, scoped, tag = 'scoped memory for tpu_custom_call.1']
    #allocation6 [shape = 'u8[262144]{0}', space=vmem, size = 0x40000, scoped, tag = 'output window, operand 0']
    %8 = vsyncpa [#allocation4], 0
    %s9 = scalar_lea.sflag [#allocation4], 1
    %10 = vsyncpa %s9, 0
    %11 = vsyncpa [#allocation5], 0
    %s12 = scalar_lea.sflag [#allocation5], 1
    %13 = vsyncpa %s12, 0
    loop: start=0, step=1, limit=10
    $region2: #{tpu_custom_call.1} parent=1 // loop_pre_header
      _
    $region3: #{tpu_custom_call.1} parent=1 // loop_header
      %s15 = sphi 0, %s19
      %p16 = scmp.ge.s32.totalorder %s15, 10
      %s23 = sphi 0, %s23
      %s25 = sphi 0, %s23
      %s26 = sphi 0, %s25
      %s40 = sphi 0, %s26
      %s46 = sphi 0, %s48
      %s49 = sphi 0, %s46
      %s50 = sphi 0, %s49
      %s66 = sphi 0, %s50
      %s72 = sphi 0, %s74
      %s75 = sphi 0, %s72
      %s76 = sphi 0, %s75
      %s92 = sphi 0, %s76
    $region4: #{tpu_custom_call.1} parent=1 // loop_header_branch
      %18 = sbr.rel (%p16) target = $region8
    $region5: #{tpu_custom_call.1} parent=1 // loop_body
      %s20 = ssub.s32 %s15, 1
      %s21 = ssub.s32 %s15, 2
      %s22 = sadd.s32 %s15, 1
      %s24 = sadd.s32 %s23, 1
      %p27 = scmp.eq.s32.totalorder %s15, 7
      %p28 = scmp.ne.s32.totalorder %s23, %s25
      %p29 = scmp.eq.s32.totalorder %s15, 0
      %p30 = por %p28, %p29
      %p31 = scmp.ne.s32.totalorder %s23, %s25
      %p32 = scmp.eq.s32.totalorder %s20, 7
      %p33 = por %p31, %p32
      %p34 = scmp.ne.s32.totalorder %s25, %s26
      %p35 = scmp.eq.s32.totalorder %s20, 0
      %p36 = por %p34, %p35
      %p37 = scmp.ne.s32.totalorder %s25, %s26
      %p38 = scmp.eq.s32.totalorder %s21, 7
      %p39 = por %p37, %p38
      %p41 = scmp.ne.s32.totalorder %s26, %s40
      %p42 = scmp.eq.s32.totalorder %s21, 0
      %p43 = por %p41, %p42
      %s44 = ssub.s32 %s15, %s22
      %p45 = scmp.eq.s32.totalorder %s44, 0
      %s47 = sadd.s32 %s46, 1
      %s48 = scalar_select %p45, %s46, %s47
      %p51 = pneg %p45
      %p52 = scmp.eq.s32.totalorder %s15, 7
      %p53 = por %p51, %p52
      %p54 = scmp.ne.s32.totalorder %s46, %s49
      %p55 = scmp.eq.s32.totalorder %s15, 0
      %p56 = por %p54, %p55
      %p57 = scmp.ne.s32.totalorder %s46, %s49
      %p58 = scmp.eq.s32.totalorder %s20, 7
      %p59 = por %p57, %p58
      %p60 = scmp.ne.s32.totalorder %s49, %s50
      %p61 = scmp.eq.s32.totalorder %s20, 0
      %p62 = por %p60, %p61
      %p63 = scmp.ne.s32.totalorder %s49, %s50
      %p64 = scmp.eq.s32.totalorder %s21, 7
      %p65 = por %p63, %p64
      %p67 = scmp.ne.s32.totalorder %s50, %s66
      %p68 = scmp.eq.s32.totalorder %s21, 0
      %p69 = por %p67, %p68
      %s70 = ssub.s32 %s15, %s22
      %p71 = scmp.eq.s32.totalorder %s70, 0
      %s73 = sadd.s32 %s72, 1
      %s74 = scalar_select %p71, %s72, %s73
      %p77 = pneg %p71
      %p78 = scmp.eq.s32.totalorder %s15, 7
      %p79 = por %p77, %p78
      %p80 = scmp.ne.s32.totalorder %s72, %s75
      %p81 = scmp.eq.s32.totalorder %s15, 0
      %p82 = por %p80, %p81
      %p83 = scmp.ne.s32.totalorder %s72, %s75
      %p84 = scmp.eq.s32.totalorder %s20, 7
      %p85 = por %p83, %p84
      %p86 = scmp.ne.s32.totalorder %s75, %s76
      %p87 = scmp.eq.s32.totalorder %s20, 0
      %p88 = por %p86, %p87
      %p89 = scmp.ne.s32.totalorder %s75, %s76
      %p90 = scmp.eq.s32.totalorder %s21, 7
      %p91 = por %p89, %p90
      %p93 = scmp.ne.s32.totalorder %s76, %s92
      %p94 = scmp.eq.s32.totalorder %s21, 0
      %p95 = por %p93, %p94
      %p96 = scmp.le.s32.totalorder 1, %s15
      %p97 = scmp.lt.s32.totalorder %s15, 9
      %p98 = pnand %p96, %p97
      %p99 = pneg %p98
      // Predicated region
      $region9: #{tpu_custom_call.1} parent=5 // pred_check
        _
      $region10: #{tpu_custom_call.1} parent=5 // pred_check_branch
        %101 = sbr.rel (%p98) target = $region12
      $region11: #{tpu_custom_call.1} parent=5 // pred_region
        %s102 = ssub.s32 %s15, 1
        // Predicated region
        $region13: #{tpu_custom_call.1} parent=11 // pred_check
          %p103 = pneg %p36
        $region14: #{tpu_custom_call.1} parent=11 // pred_check_branch
          %105 = sbr.rel (%p103) target = $region16
        $region15: #{tpu_custom_call.1} parent=11 // pred_region
          _
        $region16: #{tpu_custom_call.1} parent=11 // pred_fallthru
          _
      $region12: #{tpu_custom_call.1} parent=5 // pred_fallthru
        _
      %p106 = scmp.lt.s32.totalorder %s15, 8
      // Predicated region
      $region17: #{tpu_custom_call.1} parent=5 // pred_check
        %p107 = pneg %p106
      $region18: #{tpu_custom_call.1} parent=5 // pred_check_branch
        %109 = sbr.rel (%p107) target = $region20
      $region19: #{tpu_custom_call.1} parent=5 // pred_region
        // Predicated region
        $region21: #{tpu_custom_call.1} parent=19 // pred_check
          %p110 = pneg %p56
        $region22: #{tpu_custom_call.1} parent=19 // pred_check_branch
          %112 = sbr.rel (%p110) target = $region24
        $region23: #{tpu_custom_call.1} parent=19 // pred_region
          %s113 = sand.u32 %s46, 1
          %s114 = scalar_lea.sflag [#allocation4], %s113
          %s115 = sand.u32 %s46, 1
          %s116 = smul.addr %s115, 256
          %s117 = scalar_lea.vmem [#allocation3], %s116
          %s118 = smul.u32 4, %s15
          %s120 = ssub.s32 4096, 4096
          %121 = vsyncadd %s114, %s120
          %s122 = smul.addr %s118, 8
          %s123 = smul.addr %s122, 128
          %s124 = scalar_lea.hbm %s1, %s123
          %s125 = sshll.u32 %s117, 4
          %s126 = int_to_ptr.vmem [resolvable:$true] %s125
          %131 = dma.hbm_to_vmem [thread:$0]  %s124, 4096, %s126, %s114, 1024, 1024, 64
        $region24: #{tpu_custom_call.1} parent=19 // pred_fallthru
          _
      $region20: #{tpu_custom_call.1} parent=5 // pred_fallthru
        _
      %p132 = scmp.le.s32.totalorder 1, %s15
      %p133 = scmp.lt.s32.totalorder %s15, 9
      %p134 = pnand %p132, %p133
      %p135 = pneg %p134
      // Predicated region
      $region25: #{tpu_custom_call.1} parent=5 // pred_check
        _
      $region26: #{tpu_custom_call.1} parent=5 // pred_check_branch
        %137 = sbr.rel (%p134) target = $region28
      $region27: #{tpu_custom_call.1} parent=5 // pred_region
        %s138 = ssub.s32 %s15, 1
        %s139 = sand.u32 %s49, 1
        %s140 = scalar_lea.sflag [#allocation4], %s139
        %s141 = sand.u32 %s49, 1
        %s142 = smul.addr %s141, 256
        %s143 = scalar_lea.vmem [#allocation3], %s142
        // Predicated region
        $region29: #{tpu_custom_call.1} parent=27 // pred_check
          %p144 = pneg %p62
        $region30: #{tpu_custom_call.1} parent=27 // pred_check_branch
          %146 = sbr.rel (%p144) target = $region32
        $region31: #{tpu_custom_call.1} parent=27 // pred_region
          %147 = dma.done %s140, 4096
        $region32: #{tpu_custom_call.1} parent=27 // pred_fallthru
          _
        %p148 = pneg %p36
        %p149 = pneg %p33
        %s150 = sand.u32 %s49, 1
        %s151 = scalar_lea.sflag [#allocation4], %s150
        %s152 = sand.u32 %s49, 1
        %s153 = smul.addr %s152, 256
        %s154 = scalar_lea.vmem [#allocation3], %s153
        %p155 = pneg %p62
        %p156 = pneg %p59
        %p157 = pneg %p88
        %p158 = pneg %p85
        %s159 = sand.u32 %s75, 1
        %s160 = scalar_lea.sflag [#allocation5], %s159
        %s161 = sand.u32 %s75, 1
        %s162 = smul.addr %s161, 256
        %s163 = scalar_lea.vmem [#allocation6], %s162
        %s164 = smul.u32 4, %s20
        %s165 = smul.u32 4, %s20
        %s166 = sld [smem:[#allocation2]]
        %v167 = vld [vmem:[%s143] sm:$0xff]
        %v168 = vld [vmem:[%s143 + $0x8] sm:$0xff]
        %v169 = vld [vmem:[%s143 + $0x10] sm:$0xff]
        %v170 = vld [vmem:[%s143 + $0x18] sm:$0xff]
        %v171 = vld [vmem:[%s143 + $0x20] sm:$0xff]
        %v172 = vld [vmem:[%s143 + $0x28] sm:$0xff]
        %v173 = vld [vmem:[%s143 + $0x30] sm:$0xff]
        %v174 = vld [vmem:[%s143 + $0x38] sm:$0xff]
        %v175 = vld [vmem:[%s143 + $0x40] sm:$0xff]
        %v176 = vld [vmem:[%s143 + $0x48] sm:$0xff]
        %v177 = vld [vmem:[%s143 + $0x50] sm:$0xff]
        %v178 = vld [vmem:[%s143 + $0x58] sm:$0xff]
        %v179 = vld [vmem:[%s143 + $0x60] sm:$0xff]
        %v180 = vld [vmem:[%s143 + $0x68] sm:$0xff]
        %v181 = vld [vmem:[%s143 + $0x70] sm:$0xff]
        %v182 = vld [vmem:[%s143 + $0x78] sm:$0xff]
        %v183 = vld [vmem:[%s143 + $0x80] sm:$0xff]
        %v184 = vld [vmem:[%s143 + $0x88] sm:$0xff]
        %v185 = vld [vmem:[%s143 + $0x90] sm:$0xff]
        %v186 = vld [vmem:[%s143 + $0x98] sm:$0xff]
        %v187 = vld [vmem:[%s143 + $0xa0] sm:$0xff]
        %v188 = vld [vmem:[%s143 + $0xa8] sm:$0xff]
        %v189 = vld [vmem:[%s143 + $0xb0] sm:$0xff]
        %v190 = vld [vmem:[%s143 + $0xb8] sm:$0xff]
        %v191 = vld [vmem:[%s143 + $0xc0] sm:$0xff]
        %v192 = vld [vmem:[%s143 + $0xc8] sm:$0xff]
        %v193 = vld [vmem:[%s143 + $0xd0] sm:$0xff]
        %v194 = vld [vmem:[%s143 + $0xd8] sm:$0xff]
        %v195 = vld [vmem:[%s143 + $0xe0] sm:$0xff]
        %v196 = vld [vmem:[%s143 + $0xe8] sm:$0xff]
        %v197 = vld [vmem:[%s143 + $0xf0] sm:$0xff]
        %v198 = vld [vmem:[%s143 + $0xf8] sm:$0xff]
        %s199 = ssub.f32 0.0, %s166
        %v200 = vstv %s199
        %v201 = vmul.f32 %v167, %v200
        %v202 = vmul.f32 %v168, %v200
        %v203 = vmul.f32 %v169, %v200
        %v204 = vmul.f32 %v170, %v200
        %v205 = vmul.f32 %v171, %v200
        %v206 = vmul.f32 %v172, %v200
        %v207 = vmul.f32 %v173, %v200
        %v208 = vmul.f32 %v174, %v200
        %v209 = vmul.f32 %v175, %v200
        %v210 = vmul.f32 %v176, %v200
        %v211 = vmul.f32 %v177, %v200
        %v212 = vmul.f32 %v178, %v200
        %v213 = vmul.f32 %v179, %v200
        %v214 = vmul.f32 %v180, %v200
        %v215 = vmul.f32 %v181, %v200
        %v216 = vmul.f32 %v182, %v200
        %v217 = vmul.f32 %v183, %v200
        %v218 = vmul.f32 %v184, %v200
        %v219 = vmul.f32 %v185, %v200
        %v220 = vmul.f32 %v186, %v200
        %v221 = vmul.f32 %v187, %v200
        %v222 = vmul.f32 %v188, %v200
        %v223 = vmul.f32 %v189, %v200
        %v224 = vmul.f32 %v190, %v200
        %v225 = vmul.f32 %v191, %v200
        %v226 = vmul.f32 %v192, %v200
        %v227 = vmul.f32 %v193, %v200
        %v228 = vmul.f32 %v194, %v200
        %v229 = vmul.f32 %v195, %v200
        %v230 = vmul.f32 %v196, %v200
        %v231 = vmul.f32 %v197, %v200
        %v232 = vmul.f32 %v198, %v200
        %233 = vst [vmem:[%s163] sm:$0xff] %v201
        %234 = vst [vmem:[%s163 + $0x8] sm:$0xff] %v202
        %235 = vst [vmem:[%s163 + $0x10] sm:$0xff] %v203
        %236 = vst [vmem:[%s163 + $0x18] sm:$0xff] %v204
        %237 = vst [vmem:[%s163 + $0x20] sm:$0xff] %v205
        %238 = vst [vmem:[%s163 + $0x28] sm:$0xff] %v206
        %239 = vst [vmem:[%s163 + $0x30] sm:$0xff] %v207
        %240 = vst [vmem:[%s163 + $0x38] sm:$0xff] %v208
        %241 = vst [vmem:[%s163 + $0x40] sm:$0xff] %v209
        %242 = vst [vmem:[%s163 + $0x48] sm:$0xff] %v210
        %243 = vst [vmem:[%s163 + $0x50] sm:$0xff] %v211
        %244 = vst [vmem:[%s163 + $0x58] sm:$0xff] %v212
        %245 = vst [vmem:[%s163 + $0x60] sm:$0xff] %v213
        %246 = vst [vmem:[%s163 + $0x68] sm:$0xff] %v214
        %247 = vst [vmem:[%s163 + $0x70] sm:$0xff] %v215
        %248 = vst [vmem:[%s163 + $0x78] sm:$0xff] %v216
        %249 = vst [vmem:[%s163 + $0x80] sm:$0xff] %v217
        %250 = vst [vmem:[%s163 + $0x88] sm:$0xff] %v218
        %251 = vst [vmem:[%s163 + $0x90] sm:$0xff] %v219
        %252 = vst [vmem:[%s163 + $0x98] sm:$0xff] %v220
        %253 = vst [vmem:[%s163 + $0xa0] sm:$0xff] %v221
        %254 = vst [vmem:[%s163 + $0xa8] sm:$0xff] %v222
        %255 = vst [vmem:[%s163 + $0xb0] sm:$0xff] %v223
        %256 = vst [vmem:[%s163 + $0xb8] sm:$0xff] %v224
        %257 = vst [vmem:[%s163 + $0xc0] sm:$0xff] %v225
        %258 = vst [vmem:[%s163 + $0xc8] sm:$0xff] %v226
        %259 = vst [vmem:[%s163 + $0xd0] sm:$0xff] %v227
        %260 = vst [vmem:[%s163 + $0xd8] sm:$0xff] %v228
        %261 = vst [vmem:[%s163 + $0xe0] sm:$0xff] %v229
        %262 = vst [vmem:[%s163 + $0xe8] sm:$0xff] %v230
        %263 = vst [vmem:[%s163 + $0xf0] sm:$0xff] %v231
        %264 = vst [vmem:[%s163 + $0xf8] sm:$0xff] %v232
        %s265 = sand.u32 %s75, 1
        %s266 = scalar_lea.sflag [#allocation5], %s265
        %s267 = sand.u32 %s75, 1
        %s268 = smul.addr %s267, 256
        %s269 = scalar_lea.vmem [#allocation6], %s268
        // Predicated region
        $region33: #{tpu_custom_call.1} parent=27 // pred_check
          %p270 = pneg %p85
        $region34: #{tpu_custom_call.1} parent=27 // pred_check_branch
          %272 = sbr.rel (%p270) target = $region36
        $region35: #{tpu_custom_call.1} parent=27 // pred_region
          %s273 = smul.u32 4, %s20
          %s275 = ssub.s32 4096, 4096
          %276 = vsyncadd %s266, %s275
          %s277 = smul.addr %s273, 8
          %s278 = smul.addr %s277, 128
          %s279 = scalar_lea.hbm %s2, %s278
          %s280 = sshll.u32 %s269, 4
          %s281 = int_to_ptr.vmem [resolvable:$true] %s280
          %286 = dma.vmem_to_hbm [thread:$0]  %s281, 4096, %s279, %s266, 1024, 1024, 64
        $region36: #{tpu_custom_call.1} parent=27 // pred_fallthru
          _
      $region28: #{tpu_custom_call.1} parent=5 // pred_fallthru
        _
      %p287 = scmp.le.s32.totalorder 2, %s15
      // Predicated region
      $region37: #{tpu_custom_call.1} parent=5 // pred_check
        %p288 = pneg %p287
      $region38: #{tpu_custom_call.1} parent=5 // pred_check_branch
        %290 = sbr.rel (%p288) target = $region40
      $region39: #{tpu_custom_call.1} parent=5 // pred_region
        %s291 = ssub.s32 %s15, 2
        // Predicated region
        $region41: #{tpu_custom_call.1} parent=39 // pred_check
          %p292 = pneg %p91
        $region42: #{tpu_custom_call.1} parent=39 // pred_check_branch
          %294 = sbr.rel (%p292) target = $region44
        $region43: #{tpu_custom_call.1} parent=39 // pred_region
          %s295 = sand.u32 %s76, 1
          %s296 = scalar_lea.sflag [#allocation5], %s295
          %s297 = sand.u32 %s76, 1
          %s298 = smul.addr %s297, 256
          %s299 = scalar_lea.vmem [#allocation6], %s298
          %300 = dma.done %s296, 4096
        $region44: #{tpu_custom_call.1} parent=39 // pred_fallthru
          _
      $region40: #{tpu_custom_call.1} parent=5 // pred_fallthru
        _
    $region6: #{tpu_custom_call.1} parent=1 // loop_footer
      %s19 = sadd.s32 1, %s15
    $region7: #{tpu_custom_call.1} parent=1 // loop_footer_branch
      %14 = sbr.rel target = $region3
    $region8: #{tpu_custom_call.1} parent=1 // loop_exit
      _
    %301 = vsyncpa [#allocation4], 1
    %s302 = scalar_lea.sflag [#allocation4], 1
    %303 = vsyncpa %s302, 1
    %304 = vsyncpa [#allocation5], 1
    %s305 = scalar_lea.sflag [#allocation5], 1
    %306 = vsyncpa %s305, 1

</llo_original>
